<compile_context>
chip_gen: v7x
topology: tpu7x:2x2x1
jax: 0.10.0
libtpu: 0.0.40
codegen_flags: <defaults>
</compile_context>

<pallas_src>
import jax
import jax.numpy as jnp
from jax.experimental import pallas as pl
from jax.experimental.pallas import tpu as pltpu


def _round_up(n, m):
    return ((n + m - 1) // m) * m


# --------------------------------------------------------------------------- #
# Kernel: 2 matmuls + relu + bias adds, everything else folded into weights.  #
# --------------------------------------------------------------------------- #
def _pnn_kernel(x_ref, w1_ref, b1_ref, w2_ref, b2_ref, y_ref):
    x = x_ref[...]

    # Stage 1: both columns' fc1 in one MXU call.  h = [h0 | h1]  (TB, 2H)
    h = jnp.maximum(
        jnp.dot(x, w1_ref[...], preferred_element_type=jnp.float32) + b1_ref[...],
        0.0)

    # Stage 2: fused [y0 | y1] = h @ W2_big + b_big   (TB, 2C), f32 accumulation.
    y = jnp.dot(h.astype(w2_ref.dtype), w2_ref[...],
                preferred_element_type=jnp.float32) + b2_ref[...]

    y_ref[...] = y.astype(y_ref.dtype)


# --------------------------------------------------------------------------- #
# One-time parameter packing (outside the kernel).                            #
# --------------------------------------------------------------------------- #
def prepare_params(raw, dtype=jnp.float32):
    """Packs per-column PNN weights into the fused kernel operands.

    dtype=jnp.bfloat16 can be used on v6e/v7x to halve weight/activation
    traffic; accumulation stays f32 inside the kernel.
    """
    D, H = raw["w1_0"].shape
    C = raw["w2_0"].shape[1]

    w1 = jnp.concatenate([raw["w1_0"], raw["w1_1"]], axis=1)            # (D, 2H)
    b1 = jnp.concatenate([raw["b1_0"], raw["b1_1"]], axis=1)            # (1, 2H)

    top = jnp.concatenate([raw["w2_0"], 0.5 * raw["u_10"]], axis=1)     # (H, 2C)
    bot = jnp.concatenate([jnp.zeros((H, C), raw["w2_1"].dtype),
                           0.5 * raw["w2_1"]], axis=1)                  # (H, 2C)
    w2 = jnp.concatenate([top, bot], axis=0)                            # (2H, 2C)
    b2 = jnp.concatenate([raw["b2_0"],
                          0.5 * (raw["b2_1"] + raw["c_10"])], axis=1)   # (1, 2C)

    return {
        "w1": w1.astype(dtype), "b1": b1.astype(dtype),
        "w2": w2.astype(dtype), "b2": b2.astype(dtype),
        "num_classes": C,
    }


# --------------------------------------------------------------------------- #
# Wrapper                                                                     #
# --------------------------------------------------------------------------- #
def pnn_forward(x, packed, *, batch_tile=None):
    """Runs the 2-column PNN forward. Returns [y0, y1] (one output per column)."""
    B, D = x.shape
    C = packed["num_classes"]
    H2 = packed["w1"].shape[1]      # 2H
    C2 = packed["w2"].shape[1]      # 2C

    x = x.astype(packed["w1"].dtype)

    # Batch tile: as large as VMEM comfortably allows (fewer grid steps => less
    # per-step overhead), sublane-aligned.  Ragged batches are padded, not rejected.
    if batch_tile is None:
        TB = min(_round_up(B, 8), 512)
    else:
        TB = _round_up(batch_tile, 8)
    B_pad = _round_up(B, TB)
    if B_pad != B:
        x = jnp.pad(x, ((0, B_pad - B), (0, 0)))

    weight_spec = lambda shape: pl.BlockSpec(shape, lambda i: (0, 0))

    y = pl.pallas_call(
        _pnn_kernel,
        out_shape=jax.ShapeDtypeStruct((B_pad, C2), jnp.float32),
        grid_spec=pltpu.PrefetchScalarGridSpec(
            num_scalar_prefetch=0,
            grid=(B_pad // TB,),
            in_specs=[
                pl.BlockSpec((TB, D), lambda i: (i, 0)),      # x tile
                weight_spec((D, H2)), weight_spec((1, H2)),   # packed fc1 (both cols)
                weight_spec((H2, C2)), weight_spec((1, C2)),  # packed fused stage 2
            ],
            out_specs=pl.BlockSpec((TB, C2), lambda i: (i, 0)),
        ),
        compiler_params=pltpu.CompilerParams(
            dimension_semantics=("parallel",)),
    )(x, packed["w1"], packed["b1"], packed["w2"], packed["b2"])

    y = y[:B]                       # drop batch padding
    return [y[:, :C], y[:, C:]]     # split lane-dense [y0 | y1] outside the kernel


# --------------------------------------------------------------------------- #
# Pure-JAX reference mirroring the PyTorch PNN forward (unpacked weights).    #
# --------------------------------------------------------------------------- #
def _pnn_reference(x, p):
    h0 = jnp.maximum(x @ p["w1_0"] + p["b1_0"], 0.0)
    y0 = h0 @ p["w2_0"] + p["b2_0"]
    h1 = jnp.maximum(x @ p["w1_1"] + p["b1_1"], 0.0)
    y1 = 0.5 * (h1 @ p["w2_1"] + p["b2_1"]) + 0.5 * (h0 @ p["u_10"] + p["c_10"])
    return [y0, y1]


def _init_params(key, D, H, C):
    ks = jax.random.split(key, 10)
    norm = lambda k, shape, fan_in: (jax.random.normal(k, shape, jnp.float32)
                                     / jnp.sqrt(jnp.float32(fan_in)))
    return {
        # column 0 intra-column weights (stored as (in, out) = PyTorch W.T)
        "w1_0": norm(ks[0], (D, H), D), "b1_0": norm(ks[1], (1, H), D),
        "w2_0": norm(ks[2], (H, C), H), "b2_0": norm(ks[3], (1, C), H),
        # column 1 intra-column weights
        "w1_1": norm(ks[4], (D, H), D), "b1_1": norm(ks[5], (1, H), D),
        "w2_1": norm(ks[6], (H, C), H), "b2_1": norm(ks[7], (1, C), H),
        # column 1 lateral connection (fed with column 0's fc2 input)
        "u_10": norm(ks[8], (H, C), H), "c_10": norm(ks[9], (1, C), H),
    }


if __name__ == "__main__":
    B, D, H, C = 8, 32, 64, 16   # batch, input features, hidden, output classes

    key = jax.random.PRNGKey(0)
    k_x, k_p = jax.random.split(key)
    x = jax.random.normal(k_x, (B, D), jnp.float32)
    raw_params = _init_params(k_p, D, H, C)

    packed = prepare_params(raw_params)            # one-time packing, outside kernel
    outs = pnn_forward(x, packed)
    outs = [jax.block_until_ready(o) for o in outs]

    refs = _pnn_reference(x, raw_params)
    for o, r in zip(outs, refs):
        assert o.shape == r.shape and o.dtype == r.dtype
        assert jnp.allclose(o, r, rtol=1e-5, atol=1e-5), "mismatch vs reference"

    print("KERNEL_OK")
</pallas_src>

<mosaic_0001>
module attributes {stable_mosaic.version = 11 : i64} {
  func.func @_pnn_kernel(%arg0: i32, %arg1: memref<8x32xf32, #tpu.memory_space<vmem>>, %arg2: memref<32x128xf32, #tpu.memory_space<vmem>>, %arg3: memref<1x128xf32, #tpu.memory_space<vmem>>, %arg4: memref<128x32xf32, #tpu.memory_space<vmem>>, %arg5: memref<1x32xf32, #tpu.memory_space<vmem>>, %arg6: memref<8x32xf32, #tpu.memory_space<vmem>>) attributes {dimension_semantics = [#tpu.dimension_semantics<parallel>], iteration_bounds = array<i64: 1>, scalar_prefetch = 0 : i64, scratch_operands = 0 : i64, tpu.core_type = #tpu.core_type<tc>, window_params = [{transform_indices = @transform_0, window_bounds = array<i64: 8, 32>}, {pipeline_mode = #tpu.pipeline_mode<synchronous>, transform_indices = @transform_1, window_bounds = array<i64: 32, 128>}, {pipeline_mode = #tpu.pipeline_mode<synchronous>, transform_indices = @transform_2, window_bounds = array<i64: 1, 128>}, {pipeline_mode = #tpu.pipeline_mode<synchronous>, transform_indices = @transform_3, window_bounds = array<i64: 128, 32>}, {pipeline_mode = #tpu.pipeline_mode<synchronous>, transform_indices = @transform_4, window_bounds = array<i64: 1, 32>}, {transform_indices = @transform_5, window_bounds = array<i64: 8, 32>}]} {
    %c0 = arith.constant 0 : index
    %c0_0 = arith.constant 0 : index
    %0 = vector.load %arg1[%c0, %c0_0] : memref<8x32xf32, #tpu.memory_space<vmem>>, vector<8x32xf32>
    %c0_1 = arith.constant 0 : index
    %c0_2 = arith.constant 0 : index
    %1 = vector.load %arg2[%c0_1, %c0_2] : memref<32x128xf32, #tpu.memory_space<vmem>>, vector<32x128xf32>
    %cst = arith.constant dense<0.000000e+00> : vector<8x128xf32>
    %2 = tpu.matmul %0, %1, %cst {dimension_numbers = #tpu.dot_dimension_numbers<[1], [0], [0], [1], [0, 0, 1, 1], [], []>} : vector<8x32xf32>, vector<32x128xf32>, vector<8x128xf32> -> vector<8x128xf32>
    %c0_3 = arith.constant 0 : index
    %c0_4 = arith.constant 0 : index
    %3 = vector.load %arg3[%c0_3, %c0_4] : memref<1x128xf32, #tpu.memory_space<vmem>>, vector<1x128xf32>
    %4 = vector.broadcast %3 : vector<1x128xf32> to vector<8x128xf32>
    %5 = arith.addf %2, %4 : vector<8x128xf32>
    %cst_5 = arith.constant 0.000000e+00 : f32
    %6 = vector.broadcast %cst_5 : f32 to vector<8x128xf32>
    %7 = arith.maximumf %5, %6 : vector<8x128xf32>
    %c0_6 = arith.constant 0 : index
    %c0_7 = arith.constant 0 : index
    %8 = vector.load %arg4[%c0_6, %c0_7] : memref<128x32xf32, #tpu.memory_space<vmem>>, vector<128x32xf32>
    %cst_8 = arith.constant dense<0.000000e+00> : vector<8x32xf32>
    %9 = tpu.matmul %7, %8, %cst_8 {dimension_numbers = #tpu.dot_dimension_numbers<[1], [0], [0], [1], [0, 0, 1, 1], [], []>} : vector<8x128xf32>, vector<128x32xf32>, vector<8x32xf32> -> vector<8x32xf32>
    %c0_9 = arith.constant 0 : index
    %c0_10 = arith.constant 0 : index
    %10 = vector.load %arg5[%c0_9, %c0_10] : memref<1x32xf32, #tpu.memory_space<vmem>>, vector<1x32xf32>
    %11 = vector.broadcast %10 : vector<1x32xf32> to vector<8x32xf32>
    %12 = arith.addf %9, %11 : vector<8x32xf32>
    %c0_11 = arith.constant 0 : index
    %c0_12 = arith.constant 0 : index
    %13 = vector.load %arg6[%c0_11, %c0_12] : memref<8x32xf32, #tpu.memory_space<vmem>>, vector<8x32xf32>
    tpu.vector_store %arg6[%c0_11, %c0_12], %12 {strides = array<i32>} : memref<8x32xf32, #tpu.memory_space<vmem>>, vector<8x32xf32>,
    return
  }
  func.func @transform_0(%arg0: i32) -> (i32, i32) {
    %c0_i32 = arith.constant 0 : i32
    %c0_i32_0 = arith.constant 0 : i32
    return %arg0, %c0_i32 : i32, i32
  }
  func.func @transform_1(%arg0: i32) -> (i32, i32) {
    %c0_i32 = arith.constant 0 : i32
    %c0_i32_0 = arith.constant 0 : i32
    %c0_i32_1 = arith.constant 0 : i32
    return %c0_i32, %c0_i32_0 : i32, i32
  }
  func.func @transform_2(%arg0: i32) -> (i32, i32) {
    %c0_i32 = arith.constant 0 : i32
    %c0_i32_0 = arith.constant 0 : i32
    %c0_i32_1 = arith.constant 0 : i32
    return %c0_i32, %c0_i32_0 : i32, i32
  }
  func.func @transform_3(%arg0: i32) -> (i32, i32) {
    %c0_i32 = arith.constant 0 : i32
    %c0_i32_0 = arith.constant 0 : i32
    %c0_i32_1 = arith.constant 0 : i32
    return %c0_i32, %c0_i32_0 : i32, i32
  }
  func.func @transform_4(%arg0: i32) -> (i32, i32) {
    %c0_i32 = arith.constant 0 : i32
    %c0_i32_0 = arith.constant 0 : i32
    %c0_i32_1 = arith.constant 0 : i32
    return %c0_i32, %c0_i32_0 : i32, i32
  }
  func.func @transform_5(%arg0: i32) -> (i32, i32) {
    %c0_i32 = arith.constant 0 : i32
    %c0_i32_0 = arith.constant 0 : i32
    return %arg0, %c0_i32 : i32, i32
  }
}

</mosaic_0001>

<llo_original>
// kernel: tpu_custom_call.1
$region0: #{tpu_custom_call.1}
  #allocation0 [shape = 'u32[]', space=smem, size = 0x4, offset = 0x4, fixed_abs, tag = 'smem constant byte address 0x4 - core index']
  #allocation1 [shape = 'u32[144,128]{1,0:T(1,128)}', space=vmem, size = 0x12000, scoped, tag = 'internal scratch']
  %s0 = inlined_call_operand.vmem [shape: f32[8,32], index: 0, kind: input, shape index: {}]
  %s1 = inlined_call_operand.vmem [shape: f32[32,128], index: 1, kind: input, shape index: {}]
  %s2 = inlined_call_operand.vmem [shape: f32[1,128], index: 2, kind: input, shape index: {}]
  %s3 = inlined_call_operand.vmem [shape: f32[128,32], index: 3, kind: input, shape index: {}]
  %s4 = inlined_call_operand.vmem [shape: f32[1,32], index: 4, kind: input, shape index: {}]
  %s5 = inlined_call_operand.hbm [shape: f32[8,32], index: 5, kind: output, shape index: {}]
  %s6 = sld [smem:[#allocation0]]
  $region30: #{tpu_custom_call.1} parent=0
    _
  %s8 = ssub.s32 1, %s6
  %s9 = scalar_select 0, %s8, %s6
  $region1: #{tpu_custom_call.1} parent=0
    #allocation2 [shape = 'u8[4096]{0}', space=vmem, size = 0x1000, scoped, tag = 'output window, operand 0, single buffered']
    #allocation3 [shape = 's32[1]{0}', space=sflag, size = 0x4, scoped, tag = 'scoped memory for tpu_custom_call.1']
    %10 = vsyncpa [#allocation3], 0
    // Predicated region
    $region2: #{tpu_custom_call.1} parent=1 // pred_check
      _
    $region3: #{tpu_custom_call.1} parent=1 // pred_check_branch
      %12 = sbr.rel (0) target = $region5
    $region4: #{tpu_custom_call.1} parent=1 // pred_region
      _
    $region5: #{tpu_custom_call.1} parent=1 // pred_fallthru
      _
    // Predicated region
    $region6: #{tpu_custom_call.1} parent=1 // pred_check
      _
    $region7: #{tpu_custom_call.1} parent=1 // pred_check_branch
      %14 = sbr.rel (0) target = $region9
    $region8: #{tpu_custom_call.1} parent=1 // pred_region
      _
    $region9: #{tpu_custom_call.1} parent=1 // pred_fallthru
      _
    // Predicated region
    $region10: #{tpu_custom_call.1} parent=1 // pred_check
      _
    $region11: #{tpu_custom_call.1} parent=1 // pred_check_branch
      %16 = sbr.rel (0) target = $region13
    $region12: #{tpu_custom_call.1} parent=1 // pred_region
      _
    $region13: #{tpu_custom_call.1} parent=1 // pred_fallthru
      _
    // Predicated region
    $region14: #{tpu_custom_call.1} parent=1 // pred_check
      _
    $region15: #{tpu_custom_call.1} parent=1 // pred_check_branch
      %18 = sbr.rel (0) target = $region17
    $region16: #{tpu_custom_call.1} parent=1 // pred_region
      _
    $region17: #{tpu_custom_call.1} parent=1 // pred_fallthru
      _
    // Predicated region
    $region18: #{tpu_custom_call.1} parent=1 // pred_check
      _
    $region19: #{tpu_custom_call.1} parent=1 // pred_check_branch
      %20 = sbr.rel (0) target = $region21
    $region20: #{tpu_custom_call.1} parent=1 // pred_region
      _
    $region21: #{tpu_custom_call.1} parent=1 // pred_fallthru
      _
    %v21 = vld [vmem:[%s0] sm:$0xff]
    %v22 = vld [vmem:[%s1] sm:$0xff]
    %v23 = vld [vmem:[%s1 + $0x8] sm:$0xff]
    %v24 = vld [vmem:[%s1 + $0x10] sm:$0xff]
    %v25 = vld [vmem:[%s1 + $0x18] sm:$0xff]
    %v26 = vld [vmem:[%s2] sm:$0x1]
    %v28 = vlaneseq
    %v29 = vshrl.u32 %v28, 7
    %v30 = vsub.s32 0, %v29
    %v31 = vrot.slane %v26, %v30
    %vm33 = vcmask 261120
    %v35 = vsel %vm33, %v21, 0
    %37 = vmatprep.subr.mxu0 0.0
    %38 = vmatpush1.msra.mxu0 %v22
    %39 = vmatprep.subr.mxu0 0.0
    %40 = vmatpush1.msra.mxu0 %v23
    %41 = vmatprep.subr.mxu0 0.0
    %42 = vmatpush1.msra.mxu0 %v24
    %43 = vmatprep.subr.mxu0 0.0
    %44 = vmatpush1.msra.mxu0 %v25
    %45 = vmatprep.subr.mxu0 0.0
    %46 = vmatpush1.msra.mxu0 0.0
    %47 = vmatprep.subr.mxu0 0.0
    %48 = vmatpush1.msra.mxu0 0.0
    %49 = vmatprep.subr.mxu0 0.0
    %50 = vmatpush1.msra.mxu0 0.0
    %51 = vmatprep.subr.mxu0 0.0
    %52 = vmatpush1.msra.mxu0 0.0
    %53 = vmatprep.subr.mxu0 0.0
    %54 = vmatpush1.msra.mxu0 0.0
    %55 = vmatprep.subr.mxu0 0.0
    %56 = vmatpush1.msra.mxu0 0.0
    %57 = vmatprep.subr.mxu0 0.0
    %58 = vmatpush1.msra.mxu0 0.0
    %59 = vmatprep.subr.mxu0 0.0
    %60 = vmatpush1.msra.mxu0 0.0
    %61 = vmatprep.subr.mxu0 0.0
    %62 = vmatpush1.msra.mxu0 0.0
    %63 = vmatprep.subr.mxu0 0.0
    %64 = vmatpush1.msra.mxu0 0.0
    %65 = vmatprep.subr.mxu0 0.0
    %66 = vmatpush1.msra.mxu0 0.0
    %67 = vmatprep.subr.mxu0 0.0
    %68 = vmatpush1.msra.mxu0 0.0
    %69 = vmatprep.subr.mxu0 0.0
    %70 = vmatpush1.msra.mxu0 0.0
    %71 = vmatprep.subr.mxu0 0.0
    %72 = vmatpush1.msra.mxu0 0.0
    %73 = vmatprep.subr.mxu0 0.0
    %74 = vmatpush1.msra.mxu0 0.0
    %75 = vmatprep.subr.mxu0 0.0
    %76 = vmatpush1.msra.mxu0 0.0
    %77 = vmatprep.subr.mxu0 0.0
    %78 = vmatpush1.msra.mxu0 0.0
    %79 = vmatprep.subr.mxu0 0.0
    %80 = vmatpush1.msra.mxu0 0.0
    %81 = vmatprep.subr.mxu0 0.0
    %82 = vmatpush1.msra.mxu0 0.0
    %83 = vmatprep.subr.mxu0 0.0
    %84 = vmatpush1.msra.mxu0 0.0
    %85 = vmatprep.subr.mxu0 0.0
    %86 = vmatpush1.msra.mxu0 0.0
    %87 = vmatprep.subr.mxu0 0.0
    %88 = vmatpush1.msra.mxu0 0.0
    %89 = vmatprep.subr.mxu0 0.0
    %90 = vmatpush1.msra.mxu0 0.0
    %91 = vmatprep.subr.mxu0 0.0
    %92 = vmatpush1.msra.mxu0 0.0
    %93 = vmatprep.subr.mxu0 0.0
    %94 = vmatpush1.msra.mxu0 0.0
    %95 = vmatprep.subr.mxu0 0.0
    %96 = vmatpush1.msra.mxu0 0.0
    %97 = vmatprep.subr.mxu0 0.0
    %98 = vmatpush1.msra.mxu0 0.0
    %99 = vmatprep.subr.mxu0 0.0
    %100 = vmatpush1.msra.mxu0 0.0
    %101 = vmatprep.mubr.f32.mxu0 0.0
    %102 = vmatmul.mubr.f32.gmra.mrb[0].mxu0 %v35
    %v103 = vpop.f32.mrb[0].mxu0
    %v104 = vadd.f32 %v31, %v103
    %v105 = vpop.f32.mrb[0].mxu0
    %106 = vdwg.mxu0
    %v107 = vmax.f32 %v104, 0.0
    %v108 = vld [vmem:[%s3] sm:$0xff]
    %v109 = vld [vmem:[%s3 + $0x8] sm:$0xff]
    %v110 = vld [vmem:[%s3 + $0x10] sm:$0xff]
    %v111 = vld [vmem:[%s3 + $0x18] sm:$0xff]
    %v112 = vld [vmem:[%s3 + $0x20] sm:$0xff]
    %v113 = vld [vmem:[%s3 + $0x28] sm:$0xff]
    %v114 = vld [vmem:[%s3 + $0x30] sm:$0xff]
    %v115 = vld [vmem:[%s3 + $0x38] sm:$0xff]
    %v116 = vld [vmem:[%s3 + $0x40] sm:$0xff]
    %v117 = vld [vmem:[%s3 + $0x48] sm:$0xff]
    %v118 = vld [vmem:[%s3 + $0x50] sm:$0xff]
    %v119 = vld [vmem:[%s3 + $0x58] sm:$0xff]
    %v120 = vld [vmem:[%s3 + $0x60] sm:$0xff]
    %v121 = vld [vmem:[%s3 + $0x68] sm:$0xff]
    %v122 = vld [vmem:[%s3 + $0x70] sm:$0xff]
    %v123 = vld [vmem:[%s3 + $0x78] sm:$0xff]
    %v124 = vld [vmem:[%s4] sm:$0x1]
    %v126 = vlaneseq
    %v127 = vshrl.u32 %v126, 7
    %v128 = vsub.s32 0, %v127
    %v129 = vrot.slane %v124, %v128
    %131 = vmatprep.subr.mxu0 0.0
    %132 = vmatpush1.msra.mxu0 %v108
    %133 = vmatprep.subr.mxu0 0.0
    %134 = vmatpush1.msra.mxu0 %v109
    %135 = vmatprep.subr.mxu0 0.0
    %136 = vmatpush1.msra.mxu0 %v110
    %137 = vmatprep.subr.mxu0 0.0
    %138 = vmatpush1.msra.mxu0 %v111
    %139 = vmatprep.subr.mxu0 0.0
    %140 = vmatpush1.msra.mxu0 %v112
    %141 = vmatprep.subr.mxu0 0.0
    %142 = vmatpush1.msra.mxu0 %v113
    %143 = vmatprep.subr.mxu0 0.0
    %144 = vmatpush1.msra.mxu0 %v114
    %145 = vmatprep.subr.mxu0 0.0
    %146 = vmatpush1.msra.mxu0 %v115
    %147 = vmatprep.subr.mxu0 0.0
    %148 = vmatpush1.msra.mxu0 %v116
    %149 = vmatprep.subr.mxu0 0.0
    %150 = vmatpush1.msra.mxu0 %v117
    %151 = vmatprep.subr.mxu0 0.0
    %152 = vmatpush1.msra.mxu0 %v118
    %153 = vmatprep.subr.mxu0 0.0
    %154 = vmatpush1.msra.mxu0 %v119
    %155 = vmatprep.subr.mxu0 0.0
    %156 = vmatpush1.msra.mxu0 %v120
    %157 = vmatprep.subr.mxu0 0.0
    %158 = vmatpush1.msra.mxu0 %v121
    %159 = vmatprep.subr.mxu0 0.0
    %160 = vmatpush1.msra.mxu0 %v122
    %161 = vmatprep.subr.mxu0 0.0
    %162 = vmatpush1.msra.mxu0 %v123
    %163 = vmatprep.subr.mxu0 0.0
    %164 = vmatpush1.msra.mxu0 0.0
    %165 = vmatprep.subr.mxu0 0.0
    %166 = vmatpush1.msra.mxu0 0.0
    %167 = vmatprep.subr.mxu0 0.0
    %168 = vmatpush1.msra.mxu0 0.0
    %169 = vmatprep.subr.mxu0 0.0
    %170 = vmatpush1.msra.mxu0 0.0
    %171 = vmatprep.subr.mxu0 0.0
    %172 = vmatpush1.msra.mxu0 0.0
    %173 = vmatprep.subr.mxu0 0.0
    %174 = vmatpush1.msra.mxu0 0.0
    %175 = vmatprep.subr.mxu0 0.0
    %176 = vmatpush1.msra.mxu0 0.0
    %177 = vmatprep.subr.mxu0 0.0
    %178 = vmatpush1.msra.mxu0 0.0
    %179 = vmatprep.subr.mxu0 0.0
    %180 = vmatpush1.msra.mxu0 0.0
    %181 = vmatprep.subr.mxu0 0.0
    %182 = vmatpush1.msra.mxu0 0.0
    %183 = vmatprep.subr.mxu0 0.0
    %184 = vmatpush1.msra.mxu0 0.0
    %185 = vmatprep.subr.mxu0 0.0
    %186 = vmatpush1.msra.mxu0 0.0
    %187 = vmatprep.subr.mxu0 0.0
    %188 = vmatpush1.msra.mxu0 0.0
    %189 = vmatprep.subr.mxu0 0.0
    %190 = vmatpush1.msra.mxu0 0.0
    %191 = vmatprep.subr.mxu0 0.0
    %192 = vmatpush1.msra.mxu0 0.0
    %193 = vmatprep.subr.mxu0 0.0
    %194 = vmatpush1.msra.mxu0 0.0
    %195 = vmatprep.mubr.f32.mxu0 0.0
    %196 = vmatmul.mubr.f32.gmra.mrb[0].mxu0 %v107
    %v197 = vpop.f32.mrb[0].mxu0
    %v198 = vadd.f32 %v129, %v197
    %v199 = vpop.f32.mrb[0].mxu0
    %200 = vdwg.mxu0
    %201 = vst.msk [vmem:[#allocation2] sm:$0xff] %vm33, %v198
    // Predicated region
    $region22: #{tpu_custom_call.1} parent=1 // pred_check
      _
    $region23: #{tpu_custom_call.1} parent=1 // pred_check_branch
      %203 = sbr.rel (0) target = $region25
    $region24: #{tpu_custom_call.1} parent=1 // pred_region
      %s205 = ssub.s32 128, 128
      %206 = vsyncadd [#allocation3], %s205
      %s208 = sshll.u32 [#allocation2], 4
      %s209 = int_to_ptr.vmem [resolvable:$true] %s208
      %211 = dma.vmem_to_hbm [thread:$0]  %s209, 128, %s5, [#allocation3]
    $region25: #{tpu_custom_call.1} parent=1 // pred_fallthru
      _
    // Predicated region
    $region26: #{tpu_custom_call.1} parent=1 // pred_check
      _
    $region27: #{tpu_custom_call.1} parent=1 // pred_check_branch
      %213 = sbr.rel (0) target = $region29
    $region28: #{tpu_custom_call.1} parent=1 // pred_region
      %214 = dma.done [#allocation3], 128
    $region29: #{tpu_custom_call.1} parent=1 // pred_fallthru
      _
    %215 = vsyncpa [#allocation3], 1

</llo_original>
